<compile_context>
chip_gen: v5e
topology: v5e:2x2
jax: 0.10.0
libtpu: 0.0.40
codegen_flags: <defaults>
</compile_context>

<pallas_src>
import jax
import jax.numpy as jnp
from jax import lax
from jax.experimental import pallas as pl
from jax.experimental.pallas import tpu as pltpu


def _round_up(x, m):
    return ((x + m - 1) // m) * m


# ----------------------------------------------------------------------------
# Generation-aware VMEM limit (v5e/v6e: 128 MiB physical -> 96 MiB limit;
# v7x: 64 MiB physical -> 36 MiB limit; conservative fallback if query fails).
# ----------------------------------------------------------------------------
_VMEM_LIMIT_CACHE = None


def _vmem_limit():
    global _VMEM_LIMIT_CACHE
    if _VMEM_LIMIT_CACHE is None:
        try:
            cap = int(pltpu.get_tpu_info().vmem_capacity_bytes)
        except Exception:
            cap = 64 << 20
        _VMEM_LIMIT_CACHE = (96 << 20) if cap >= (96 << 20) else (36 << 20)
    return _VMEM_LIMIT_CACHE


# ----------------------------------------------------------------------------
# In-kernel helpers
# ----------------------------------------------------------------------------
def _erf_approx(x):
    # Abramowitz & Stegun 7.1.26 (max abs err ~1.5e-7); exact divide (not the
    # approx reciprocal) so the GELU tracks torch nn.GELU closely.
    a1, a2, a3, a4, a5 = 0.254829592, -0.284496736, 1.421413741, -1.453152027, 1.061405429
    p = 0.3275911
    ax = jnp.abs(x)
    t = 1.0 / (1.0 + p * ax)
    poly = ((((a5 * t + a4) * t + a3) * t + a2) * t + a1) * t
    y = 1.0 - poly * jnp.exp(-ax * ax)
    return jnp.where(x >= 0, y, -y)


# ----------------------------------------------------------------------------
# Kernel 1: raw point embed  (Conv1d(6,E,1,bias=False) + BN + ReLU)
#   BN scale folded into w (bf16, lane-padded to a multiple of 128).
# ----------------------------------------------------------------------------
def _embed_kernel(x_ref, w_ref, b_ref, o_ref):
    y = jnp.dot(x_ref[...].astype(jnp.bfloat16), w_ref[...],
                preferred_element_type=jnp.float32)
    o_ref[...] = jnp.maximum(y + b_ref[...], 0.0).astype(o_ref.dtype)


def raw_point_embed(x, emb):
    """x: (M, 6) f32 -> (M, E) f32."""
    M, Cin = x.shape
    w, bias, E = emb["w"], emb["bias"], emb["out_dim"]
    Cp = w.shape[1]                               # lane-padded out channels
    tm = min(2048, _round_up(M, 8))
    if M > 8 and _round_up(M, tm) // tm < 2:      # >= 2 grid steps (v7x megacore)
        tm = max(8, _round_up((M + 1) // 2, 8))
    M_pad = _round_up(M, tm)
    if M_pad != M:
        x = jnp.pad(x, ((0, M_pad - M), (0, 0)))
    out = pl.pallas_call(
        _embed_kernel,
        out_shape=jax.ShapeDtypeStruct((M_pad, Cp), jnp.float32),
        grid=(M_pad // tm,),
        in_specs=[
            pl.BlockSpec((tm, Cin), lambda i: (i, 0)),
            pl.BlockSpec((Cin, Cp), lambda i: (0, 0)),
            pl.BlockSpec((1, Cp), lambda i: (0, 0)),
        ],
        out_specs=pl.BlockSpec((tm, Cp), lambda i: (i, 0)),
        compiler_params=pltpu.CompilerParams(
            dimension_semantics=("parallel",),
            vmem_limit_bytes=_vmem_limit()),
    )(x, w, bias)
    return out[:M, :E]


# ----------------------------------------------------------------------------
# Kernel 2: furthest point sampling (VMEM-resident running distance).
#   xyz_t: (B, 3, N) -> centroids (B, npoint) int32.  Start index fixed at 0.
# ----------------------------------------------------------------------------
def _fps_kernel(xyz_ref, cent_ref):
    N = xyz_ref.shape[2]
    NP = cent_ref.shape[1]
    p = xyz_ref[...]                              # (1, 3, N)
    x0 = p[:, 0, :]                               # (1, N)
    x1 = p[:, 1, :]
    x2 = p[:, 2, :]
    lane_n = lax.broadcasted_iota(jnp.int32, (1, N), 1)
    lane_nf = lane_n.astype(jnp.float32)
    lane_p = lax.broadcasted_iota(jnp.int32, (1, NP), 1)

    def body(i, carry):
        dist, far, cent = carry                   # (1,N) f32, (1,1) i32, (1,NP) i32
        cent = jnp.where(lane_p == i, far, cent)
        sel = (lane_n == far).astype(jnp.float32)
        c0 = jnp.sum(sel * x0, axis=1, keepdims=True)
        c1 = jnp.sum(sel * x1, axis=1, keepdims=True)
        c2 = jnp.sum(sel * x2, axis=1, keepdims=True)
        d = (x0 - c0) ** 2 + (x1 - c1) ** 2 + (x2 - c2) ** 2
        nd = jnp.minimum(dist, d)                 # mask-update == elementwise min
        mx = jnp.max(nd, axis=1, keepdims=True)
        far_new = jnp.min(jnp.where(nd == mx, lane_nf, float(N)),
                          axis=1, keepdims=True).astype(jnp.int32)
        return nd, far_new, cent

    dist0 = jnp.full((1, N), 1e10, jnp.float32)
    far0 = jnp.zeros((1, 1), jnp.int32)
    cent0 = jnp.zeros((1, NP), jnp.int32)
    _, _, cent = lax.fori_loop(0, NP, body, (dist0, far0, cent0))
    cent_ref[...] = cent


def furthest_point_sample(xyz, npoint):
    """xyz: (B, N, 3) -> (B, npoint) int32 (deterministic start at index 0)."""
    B, N, _ = xyz.shape
    xyz_t = jnp.swapaxes(xyz, 1, 2)               # (B, 3, N)
    return pl.pallas_call(
        _fps_kernel,
        out_shape=jax.ShapeDtypeStruct((B, npoint), jnp.int32),
        grid=(B,),
        in_specs=[pl.BlockSpec((1, 3, N), lambda b: (b, 0, 0))],
        out_specs=pl.BlockSpec((1, npoint), lambda b: (b, 0)),
        compiler_params=pltpu.CompilerParams(
            dimension_semantics=("parallel",),
            vmem_limit_bytes=_vmem_limit()),
    )(xyz_t)


# ----------------------------------------------------------------------------
# Kernel 3: squared euclidean distance (VPU broadcast FMAs, no MXU)
# ----------------------------------------------------------------------------
def _sqdist_kernel(a_ref, bt_ref, o_ref):
    a = a_ref[0]          # (ts, 3)
    bt = bt_ref[0]        # (3, tn)
    d0 = a[:, 0:1] - bt[0:1, :]
    d1 = a[:, 1:2] - bt[1:2, :]
    d2 = a[:, 2:3] - bt[2:3, :]
    o_ref[0] = (d0 * d0 + d1 * d1 + d2 * d2).astype(o_ref.dtype)


def square_distance(src, dst):
    """src: (B, S, 3), dst: (B, N, 3) -> (B, S, N)."""
    B, S, C = src.shape
    assert C == 3
    N = dst.shape[1]
    ts = min(256, _round_up(S, 8))
    tn = min(2048, _round_up(N, 128))             # cover full N per step if it fits
    S_pad = _round_up(S, ts)
    N_pad = _round_up(N, tn)
    if S_pad != S:
        src = jnp.pad(src, ((0, 0), (0, S_pad - S), (0, 0)))
    dst_t = jnp.swapaxes(dst, 1, 2)               # (B, 3, N)
    if N_pad != N:
        dst_t = jnp.pad(dst_t, ((0, 0), (0, 0), (0, N_pad - N)))
    out = pl.pallas_call(
        _sqdist_kernel,
        out_shape=jax.ShapeDtypeStruct((B, S_pad, N_pad), src.dtype),
        grid=(B, S_pad // ts, N_pad // tn),
        in_specs=[
            pl.BlockSpec((1, ts, 3), lambda b, si, ni: (b, si, 0)),
            pl.BlockSpec((1, 3, tn), lambda b, si, ni: (b, 0, ni)),
        ],
        out_specs=pl.BlockSpec((1, ts, tn), lambda b, si, ni: (b, si, ni)),
        compiler_params=pltpu.CompilerParams(
            dimension_semantics=("parallel", "parallel", "parallel"),
            vmem_limit_bytes=_vmem_limit()),
    )(src, dst_t)
    return out[:, :S, :N]


# ----------------------------------------------------------------------------
# Kernel 4: fused stage body
#   (knn - lc) -> Linear1(split concat) + BN(+bias) + ReLU
#   + PosE_Geo (single sin, phase-shifted) -> Linear2Layer -> max over K
#   -> BN1d -> GELU
# ----------------------------------------------------------------------------
def _stage_fused_kernel(knn_x_ref, lc_x_ref, knn_xyz_ref, lc_xyz_ref,
                        w_top_ref, w_bot_ref, w21_ref, w22_ref,
                        vd_ref, vh_ref, o_ref):
    tr, K, Dh = knn_x_ref.shape
    D = o_ref.shape[1]
    F2 = D // 3                                   # 2 * feat_dim per coordinate

    # Packed per-channel vectors.
    b1 = vd_ref[0:1, :]                           # lin1 BN bias (scale in weights)
    b22 = vd_ref[1:2, :]                          # linear2.net2 bias
    ps = vd_ref[2:3, :]                           # pooling BN scale
    pb = vd_ref[3:4, :]                           # pooling BN bias
    pe_s = vd_ref[4:5, :].reshape(1, 1, D)        # PE scale (incl. 1/(std_xyz+eps))
    pe_p = vd_ref[5:6, :].reshape(1, 1, D)        # PE phase ((c%2)*pi/2)
    b21 = vh_ref[0:1, :]                          # linear2.net1 bias

    knn_x = knn_x_ref[...]                        # (tr, K, Dh)
    lc_x = lc_x_ref[...]                          # (tr, Dh)
    # (knn_x - mean_x); the 1/(std+eps) scalar + BN scale are folded into w_top.
    diff_x = (knn_x - lc_x[:, None, :]).reshape(tr * K, Dh)

    # Linear1Layer on cat([knn_x_n, lc_x]) == two half matmuls (lc broadcast).
    h = jnp.dot(diff_x.astype(jnp.bfloat16), w_top_ref[...],
                preferred_element_type=jnp.float32)                     # (tr*K, D)
    lc_term = jnp.dot(lc_x.astype(jnp.bfloat16), w_bot_ref[...],
                      preferred_element_type=jnp.float32)               # (tr, D)
    h = h.reshape(tr, K, D) + lc_term[:, None, :]
    h = jnp.maximum(h + b1, 0.0)                                        # BN bias + ReLU

    # PosE_Geo on normalized knn_xyz; channel c = ci*2F + 2f + {0:sin,1:cos}.
    # cos(x) == sin(x + pi/2) -> single EUP transcendental per element.
    knn_xyz = knn_xyz_ref[...]                    # (tr, K, 3)
    lc_xyz = lc_xyz_ref[...]                      # (tr, 3)
    diff_xyz = knn_xyz - lc_xyz[:, None, :]       # (tr, K, 3)
    lane = lax.broadcasted_iota(jnp.int32, (1, 1, D), 2)
    ci = lane // F2
    coord = jnp.where(ci == 0, diff_xyz[:, :, 0:1],
                      jnp.where(ci == 1, diff_xyz[:, :, 1:2],
                                diff_xyz[:, :, 2:3]))                   # (tr, K, D)
    pe = jnp.sin(coord * pe_s + pe_p)                                   # (tr, K, D)

    xw = (h + pe).reshape(tr * K, D)              # knn_x_w

    # Linear2Layer: relu(bn2(conv2(relu(bn1(conv1(xw))))) + xw); scales in weights.
    t = jnp.dot(xw.astype(jnp.bfloat16), w21_ref[...],
                preferred_element_type=jnp.float32)                     # (tr*K, Dh)
    t = jnp.maximum(t + b21, 0.0)
    y = jnp.dot(t.astype(jnp.bfloat16), w22_ref[...],
                preferred_element_type=jnp.float32)                     # (tr*K, D)
    y = jnp.maximum(y + b22 + xw, 0.0)

    # Pooling: max over K (XLU sublane reduce) + BN1d + exact-erf GELU.
    m = jnp.max(y.reshape(tr, K, D), axis=1)                            # (tr, D)
    z = m * ps + pb
    g = 0.5 * z * (1.0 + _erf_approx(z * 0.7071067811865476))
    o_ref[...] = g.astype(o_ref.dtype)


def _stage_row_tile(R, K, Dh, D, vmem_limit):
    # Per-group-row f32 activation footprint (double-buffered inputs + live
    # (K, D)-sized intermediates) plus double-buffered bf16 weights.
    act_per_row = 4 * (2 * (K * (Dh + 3) + Dh + 3) + K * (2 * Dh + 4 * D) + 2 * D)
    weight_bytes = 2 * 2 * (4 * Dh * D)           # bf16, double-buffered
    budget = max(vmem_limit - weight_bytes - (4 << 20), 2 << 20)
    tr = (budget // act_per_row) // 8 * 8
    tr = min(tr, _round_up(max(1, 4096 // K), 8))  # ~2k-4k matmul rows per step
    tr = max(8, min(tr, _round_up(R, 8)))
    if R > 8 and _round_up(R, tr) // tr < 2:       # >= 2 steps for v7x's 2 TCs
        tr = max(8, _round_up((R + 1) // 2, 8))
    return tr


def stage_fused(knn_x, lc_x, knn_xyz, lc_xyz, st, inv_std_x, inv_std_xyz):
    """knn_x: (R,K,Dh), lc_x: (R,Dh), knn_xyz: (R,K,3), lc_xyz: (R,3) -> (R,D)."""
    R, K, Dh = knn_x.shape
    D = st["out_dim"]

    # Runtime scalar folds (once per stage per forward, NOT per grid step):
    w_top = (st["w_top"] * inv_std_x).astype(jnp.bfloat16)             # (Dh, D)
    vecs_d = jnp.stack([st["b1"], st["b22"], st["pool_scale"], st["pool_bias"],
                        st["pe_base"] * inv_std_xyz, st["pe_phase"]], axis=0)  # (6, D)
    vec_dh = st["b21"].reshape(1, Dh)

    tr = _stage_row_tile(R, K, Dh, D, _vmem_limit())
    R_pad = _round_up(R, tr)
    if R_pad != R:
        pad = R_pad - R
        knn_x = jnp.pad(knn_x, ((0, pad), (0, 0), (0, 0)))
        lc_x = jnp.pad(lc_x, ((0, pad), (0, 0)))
        knn_xyz = jnp.pad(knn_xyz, ((0, pad), (0, 0), (0, 0)))
        lc_xyz = jnp.pad(lc_xyz, ((0, pad), (0, 0)))

    # NOTE: output D below 128 (demo config) keeps masked tail stores; accepted —
    # this kernel is DMA/VPU-bound at these dims, not store-path bound.
    out = pl.pallas_call(
        _stage_fused_kernel,
        out_shape=jax.ShapeDtypeStruct((R_pad, D), knn_x.dtype),
        grid=(R_pad // tr,),
        in_specs=[
            pl.BlockSpec((tr, K, Dh), lambda i: (i, 0, 0)),
            pl.BlockSpec((tr, Dh), lambda i: (i, 0)),
            pl.BlockSpec((tr, K, 3), lambda i: (i, 0, 0)),
            pl.BlockSpec((tr, 3), lambda i: (i, 0)),
            pl.BlockSpec((Dh, D), lambda i: (0, 0)),     # w_top (bf16, BN+std folded)
            pl.BlockSpec((Dh, D), lambda i: (0, 0)),     # w_bot (bf16, BN folded)
            pl.BlockSpec((D, Dh), lambda i: (0, 0)),     # linear2.net1 w (bf16)
            pl.BlockSpec((Dh, D), lambda i: (0, 0)),     # linear2.net2 w (bf16)
            pl.BlockSpec((6, D), lambda i: (0, 0)),      # packed (D,) vectors
            pl.BlockSpec((1, Dh), lambda i: (0, 0)),     # packed (Dh,) vectors
        ],
        out_specs=pl.BlockSpec((tr, D), lambda i: (i, 0)),
        compiler_params=pltpu.CompilerParams(
            dimension_semantics=("parallel",),
            vmem_limit_bytes=_vmem_limit()),
    )(knn_x, lc_x, knn_xyz, lc_xyz,
      w_top, st["w_bot"], st["l2_w1"], st["l2_w2"], vecs_d, vec_dh)
    return out[:R]


# ----------------------------------------------------------------------------
# Plain-JAX glue (data-dependent gathers / top-k)
# ----------------------------------------------------------------------------
def index_points(points, idx):
    """points: (B, N, C), idx: (B, ...) int -> (B, ..., C)."""
    B = points.shape[0]
    batch = jnp.arange(B).reshape((B,) + (1,) * (idx.ndim - 1))
    return points[batch, idx]


# ----------------------------------------------------------------------------
# Parameters (deterministic synthetic init; BN/conv-bias folded, weights bf16)
# ----------------------------------------------------------------------------
def _fold_bn(gamma, beta, mean, var, conv_bias=None, eps=1e-5):
    scale = gamma / jnp.sqrt(var + eps)
    bias = beta - mean * scale
    if conv_bias is not None:
        bias = bias + conv_bias * scale
    return scale, bias


def init_params(key, cfg):
    keys = iter(jax.random.split(key, 128))

    def nrm(shape, s=0.1):
        return s * jax.random.normal(next(keys), shape, jnp.float32)

    def bn(c):
        gamma = 1.0 + 0.1 * jax.random.normal(next(keys), (c,), jnp.float32)
        beta = 0.1 * jax.random.normal(next(keys), (c,), jnp.float32)
        mean = 0.1 * jax.random.normal(next(keys), (c,), jnp.float32)
        var = 0.5 + jax.random.uniform(next(keys), (c,), jnp.float32)
        return gamma, beta, mean, var

    E = cfg["embed_dim"]
    params = {}

    # raw_point_embed: Conv1d(6,E,bias=False)+BN+ReLU. Scale folded into w,
    # out channels zero-padded to a 128 multiple (lane-dense stores), bf16.
    w_e = nrm((6, E))
    s_e, b_e = _fold_bn(*bn(E))
    Ep = _round_up(E, 128)
    w_e_f = jnp.zeros((6, Ep), jnp.float32).at[:, :E].set(w_e * s_e[None, :])
    b_e_f = jnp.zeros((1, Ep), jnp.float32).at[:, :E].set(b_e[None, :])
    params["embed"] = {"w": w_e_f.astype(jnp.bfloat16), "bias": b_e_f, "out_dim": E}

    stages = []
    out_dim, group_num = E, cfg["input_points"]
    alpha, beta = 1.0, 1.0        # LGA.__init__ overrides PointNN's alpha/beta to (1, 1)
    for _ in range(cfg["num_stages"]):
        out_dim *= 2
        group_num //= 2
        D, Dh = out_dim, out_dim // 2
        assert D % 6 == 0, "PosE_Geo requires out_dim divisible by 6"

        s1, b1 = _fold_bn(*bn(D))                                 # linear1 BN (no conv bias)
        c1b, c2b = nrm((Dh,)), nrm((D,))
        g, be, m, v = bn(Dh)
        s21, b21 = _fold_bn(g, be, m, v, conv_bias=c1b)           # linear2.net1
        g, be, m, v = bn(D)
        s22, b22 = _fold_bn(g, be, m, v, conv_bias=c2b)           # linear2.net2
        ps, pb = _fold_bn(*bn(D))                                 # pooling BN1d

        # Conv1d(D,D) over cat([knn_x_n, lc_x]) split into two (Dh,D) halves;
        # static BN scale s1 folded in here, runtime 1/(std_x+eps) in stage_fused.
        w_top = nrm((Dh, D)) * s1[None, :]                        # kept f32 (runtime fold)
        w_bot = (nrm((Dh, D)) * s1[None, :]).astype(jnp.bfloat16)
        l2_w1 = (nrm((D, Dh)) * s21[None, :]).astype(jnp.bfloat16)
        l2_w2 = (nrm((Dh, D)) * s22[None, :]).astype(jnp.bfloat16)

        # PosE_Geo constants (channel = ci*2F + 2f + {0:sin, 1:cos}).
        fdim = D // 6
        f_idx = (jnp.arange(D // 3) // 2).astype(jnp.float32)
        dim_embed = jnp.power(jnp.float32(alpha), f_idx / fdim)   # (2F,)
        pe_base = jnp.tile(jnp.float32(beta) / dim_embed, 3)      # (D,)
        pe_phase = jnp.tile((jnp.arange(D // 3) % 2).astype(jnp.float32)
                            * (jnp.pi / 2), 3)                    # (D,)

        stages.append(dict(
            group_num=group_num, out_dim=D,
            w_top=w_top, w_bot=w_bot, l2_w1=l2_w1, l2_w2=l2_w2,
            b1=b1, b21=b21, b22=b22, pool_scale=ps, pool_bias=pb,
            pe_base=pe_base, pe_phase=pe_phase,
        ))
    params["stages"] = stages
    params["class_embedding"] = jax.random.normal(next(keys), (1, 1, out_dim), jnp.float32)
    return params


# ----------------------------------------------------------------------------
# PointNN forward
# ----------------------------------------------------------------------------
def pointnn_forward(x_in, params, cfg):
    """x_in: (B, N, 6) float32 -> (feature_final, knn_xyz, xyz, None)."""
    B, N, _ = x_in.shape
    xyz = x_in[..., :3]
    # NOTE: the reference also tracks rgb, but every rgb gather is dead code
    # (values never read) -> dropped for performance.

    feat = raw_point_embed(x_in.reshape(B * N, 6), params["embed"])
    x = feat.reshape(B, N, -1)          # == torch x.permute(0, 2, 1)

    K = cfg["k"]
    knn_xyz = None
    for st in params["stages"]:
        G, D = st["group_num"], st["out_dim"]
        Dh = D // 2

        # ---- FPS_kNN ----
        fps_idx = furthest_point_sample(xyz, G)              # Pallas kernel
        lc_xyz = index_points(xyz, fps_idx)                  # (B, G, 3)
        lc_x = index_points(x, fps_idx)                      # (B, G, Dh)
        sqd = square_distance(lc_xyz, xyz)                   # Pallas VPU kernel
        # TODO(synk): fuse the K-smallest selection into the distance kernel to
        # avoid the (B,G,N) HBM round trip; top_k stays in XLA for now.
        _, knn_idx = lax.top_k(-sqd, K)
        knn_xyz = index_points(xyz, knn_idx)                 # (B, G, K, 3)
        knn_x = index_points(x, knn_idx)                     # (B, G, K, Dh)

        # ---- LGA scalar stats (global unbiased std, matches torch.std()) ----
        std_x = jnp.std(knn_x - lc_x[:, :, None, :], ddof=1)
        std_xyz = jnp.std(knn_xyz - lc_xyz[:, :, None, :], ddof=1)
        inv_std_x = 1.0 / (std_x + 1e-5)
        inv_std_xyz = 1.0 / (std_xyz + 1e-5)

        # ---- fused LGA + Pooling stage kernel ----
        R = B * G
        pooled = stage_fused(knn_x.reshape(R, K, Dh), lc_x.reshape(R, Dh),
                             knn_xyz.reshape(R, K, 3), lc_xyz.reshape(R, 3),
                             st, inv_std_x, inv_std_xyz)
        x = pooled.reshape(B, G, D)      # == torch lc_x.permute(0, 2, 1)
        xyz = lc_xyz
        N = G

    class_embed = jnp.broadcast_to(params["class_embedding"],
                                   (B, 1, x.shape[-1])).astype(x.dtype)
    feature_final = jnp.concatenate([class_embed, x], axis=1)
    return feature_final, knn_xyz, xyz, None


# ----------------------------------------------------------------------------
if __name__ == "__main__":
    cfg = dict(input_points=32, num_stages=2, embed_dim=24, k=8,
               LGA_dim=[2, 2], point_dims=6)
    key = jax.random.PRNGKey(0)
    kp, kx = jax.random.split(key)
    params = init_params(kp, cfg)

    B = 2
    x = jax.random.normal(kx, (B, cfg["input_points"], 6), jnp.float32)

    feature_final, knn_xyz, xyz, _ = pointnn_forward(x, params, cfg)
    jax.block_until_ready((feature_final, knn_xyz, xyz))

    G_final = cfg["input_points"] // (2 ** cfg["num_stages"])
    D_final = cfg["embed_dim"] * (2 ** cfg["num_stages"])
    assert feature_final.shape == (B, G_final + 1, D_final), feature_final.shape
    assert knn_xyz.shape == (B, G_final, cfg["k"], 3), knn_xyz.shape
    assert xyz.shape == (B, G_final, 3), xyz.shape
    assert feature_final.dtype == jnp.float32
    assert bool(jnp.all(jnp.isfinite(feature_final)))

    print("KERNEL_OK")
</pallas_src>

<mosaic_0001>
module attributes {stable_mosaic.version = 11 : i64} {
  func.func @_embed_kernel(%arg0: i32, %arg1: memref<32x6xf32, #tpu.memory_space<vmem>>, %arg2: memref<6x128xbf16, #tpu.memory_space<vmem>>, %arg3: memref<1x128xf32, #tpu.memory_space<vmem>>, %arg4: memref<32x128xf32, #tpu.memory_space<vmem>>) attributes {dimension_semantics = [#tpu.dimension_semantics<parallel>], iteration_bounds = array<i64: 2>, scalar_prefetch = 0 : i64, scratch_operands = 0 : i64, tpu.core_type = #tpu.core_type<tc>, window_params = [{transform_indices = @transform_0, window_bounds = array<i64: 32, 6>}, {pipeline_mode = #tpu.pipeline_mode<synchronous>, transform_indices = @transform_1, window_bounds = array<i64: 6, 128>}, {pipeline_mode = #tpu.pipeline_mode<synchronous>, transform_indices = @transform_2, window_bounds = array<i64: 1, 128>}, {transform_indices = @transform_3, window_bounds = array<i64: 32, 128>}]} {
    %c0 = arith.constant 0 : index
    %c0_0 = arith.constant 0 : index
    %0 = vector.load %arg1[%c0, %c0_0] : memref<32x6xf32, #tpu.memory_space<vmem>>, vector<32x6xf32>
    %1 = arith.truncf %0 : vector<32x6xf32> to vector<32x6xbf16>
    %c0_1 = arith.constant 0 : index
    %c0_2 = arith.constant 0 : index
    %2 = vector.load %arg2[%c0_1, %c0_2] : memref<6x128xbf16, #tpu.memory_space<vmem>>, vector<6x128xbf16>
    %cst = arith.constant dense<0.000000e+00> : vector<32x128xf32>
    %3 = tpu.matmul %1, %2, %cst {dimension_numbers = #tpu.dot_dimension_numbers<[1], [0], [0], [1], [0, 0, 1, 1], [], []>} : vector<32x6xbf16>, vector<6x128xbf16>, vector<32x128xf32> -> vector<32x128xf32>
    %c0_3 = arith.constant 0 : index
    %c0_4 = arith.constant 0 : index
    %4 = vector.load %arg3[%c0_3, %c0_4] : memref<1x128xf32, #tpu.memory_space<vmem>>, vector<1x128xf32>
    %5 = vector.broadcast %4 : vector<1x128xf32> to vector<32x128xf32>
    %6 = arith.addf %3, %5 : vector<32x128xf32>
    %cst_5 = arith.constant 0.000000e+00 : f32
    %7 = vector.broadcast %cst_5 : f32 to vector<32x128xf32>
    %8 = arith.maximumf %6, %7 : vector<32x128xf32>
    %c0_6 = arith.constant 0 : index
    %c0_7 = arith.constant 0 : index
    %9 = vector.load %arg4[%c0_6, %c0_7] : memref<32x128xf32, #tpu.memory_space<vmem>>, vector<32x128xf32>
    tpu.vector_store %arg4[%c0_6, %c0_7], %8 {strides = array<i32>} : memref<32x128xf32, #tpu.memory_space<vmem>>, vector<32x128xf32>,
    return
  }
  func.func @transform_0(%arg0: i32) -> (i32, i32) {
    %c0_i32 = arith.constant 0 : i32
    %c0_i32_0 = arith.constant 0 : i32
    return %arg0, %c0_i32 : i32, i32
  }
  func.func @transform_1(%arg0: i32) -> (i32, i32) {
    %c0_i32 = arith.constant 0 : i32
    %c0_i32_0 = arith.constant 0 : i32
    %c0_i32_1 = arith.constant 0 : i32
    return %c0_i32, %c0_i32_0 : i32, i32
  }
  func.func @transform_2(%arg0: i32) -> (i32, i32) {
    %c0_i32 = arith.constant 0 : i32
    %c0_i32_0 = arith.constant 0 : i32
    %c0_i32_1 = arith.constant 0 : i32
    return %c0_i32, %c0_i32_0 : i32, i32
  }
  func.func @transform_3(%arg0: i32) -> (i32, i32) {
    %c0_i32 = arith.constant 0 : i32
    %c0_i32_0 = arith.constant 0 : i32
    return %arg0, %c0_i32 : i32, i32
  }
}

</mosaic_0001>

<llo_original>
// kernel: tpu_custom_call.1
$region0: #{tpu_custom_call.1}
  #allocation0 [shape = 'u32[]', space=smem, size = 0x4, offset = 0x4, fixed_abs, tag = 'smem constant byte address 0x4 - core index']
  #allocation1 [shape = 'u32[72,128]{1,0:T(1,128)}', space=vmem, size = 0x9000, scoped, tag = 'internal scratch']
  %s0 = inlined_call_operand.vmem [shape: f32[64,6], index: 0, kind: input, shape index: {}]
  %s1 = inlined_call_operand.vmem [shape: bf16[6,128], index: 1, kind: input, shape index: {}]
  %s2 = inlined_call_operand.vmem [shape: f32[1,128], index: 2, kind: input, shape index: {}]
  %s3 = inlined_call_operand.hbm [shape: f32[64,128], index: 3, kind: output, shape index: {}]
  %s4 = sld [smem:[#allocation0]]
  $region45: #{tpu_custom_call.1} parent=0
    _
  %s6 = ssub.s32 1, %s4
  %s7 = scalar_select 0, %s6, %s4
  $region1: #{tpu_custom_call.1} parent=0
    #allocation2 [shape = 'u8[32768]{0}', space=vmem, size = 0x8000, scoped, tag = 'output window, operand 0']
    #allocation3 [shape = 's32[2]{0}', space=sflag, size = 0x8, scoped, tag = 'scoped memory for tpu_custom_call.1']
    %8 = vsyncpa [#allocation3], 0
    %s9 = scalar_lea.sflag [#allocation3], 1
    %10 = vsyncpa %s9, 0
    loop: start=0, step=1, limit=4
    $region2: #{tpu_custom_call.1} parent=1 // loop_pre_header
      _
    $region3: #{tpu_custom_call.1} parent=1 // loop_header
      %s12 = sphi 0, %s16
      %p13 = scmp.ge.s32.totalorder %s12, 4
      %s22 = sphi 0, %s24
      %s25 = sphi 0, %s22
      %s26 = sphi 0, %s25
      %s42 = sphi 0, %s26
      %s46 = sphi 0, %s46
      %s48 = sphi 0, %s46
      %s49 = sphi 0, %s48
      %s63 = sphi 0, %s49
      %s67 = sphi 0, %s67
      %s69 = sphi 0, %s67
      %s70 = sphi 0, %s69
      %s84 = sphi 0, %s70
      %s90 = sphi 0, %s92
      %s93 = sphi 0, %s90
      %s94 = sphi 0, %s93
      %s110 = sphi 0, %s94
    $region4: #{tpu_custom_call.1} parent=1 // loop_header_branch
      %15 = sbr.rel (%p13) target = $region8
    $region5: #{tpu_custom_call.1} parent=1 // loop_body
      %s17 = ssub.s32 %s12, 1
      %s18 = ssub.s32 %s12, 2
      %s19 = sadd.s32 %s12, 1
      %s20 = ssub.s32 %s12, %s19
      %p21 = scmp.eq.s32.totalorder %s20, 0
      %s23 = sadd.s32 %s22, 1
      %s24 = scalar_select %p21, %s22, %s23
      %p27 = pneg %p21
      %p28 = scmp.eq.s32.totalorder %s12, 1
      %p29 = por %p27, %p28
      %p30 = scmp.ne.s32.totalorder %s22, %s25
      %p31 = scmp.eq.s32.totalorder %s12, 0
      %p32 = por %p30, %p31
      %p33 = scmp.ne.s32.totalorder %s22, %s25
      %p34 = scmp.eq.s32.totalorder %s17, 1
      %p35 = por %p33, %p34
      %p36 = scmp.ne.s32.totalorder %s25, %s26
      %p37 = scmp.eq.s32.totalorder %s17, 0
      %p38 = por %p36, %p37
      %p39 = scmp.ne.s32.totalorder %s25, %s26
      %p40 = scmp.eq.s32.totalorder %s18, 1
      %p41 = por %p39, %p40
      %p43 = scmp.ne.s32.totalorder %s26, %s42
      %p44 = scmp.eq.s32.totalorder %s18, 0
      %p45 = por %p43, %p44
      %s47 = sadd.s32 %s46, 1
      %p50 = scmp.eq.s32.totalorder %s12, 1
      %p51 = scmp.ne.s32.totalorder %s46, %s48
      %p52 = scmp.eq.s32.totalorder %s12, 0
      %p53 = por %p51, %p52
      %p54 = scmp.ne.s32.totalorder %s46, %s48
      %p55 = scmp.eq.s32.totalorder %s17, 1
      %p56 = por %p54, %p55
      %p57 = scmp.ne.s32.totalorder %s48, %s49
      %p58 = scmp.eq.s32.totalorder %s17, 0
      %p59 = por %p57, %p58
      %p60 = scmp.ne.s32.totalorder %s48, %s49
      %p61 = scmp.eq.s32.totalorder %s18, 1
      %p62 = por %p60, %p61
      %p64 = scmp.ne.s32.totalorder %s49, %s63
      %p65 = scmp.eq.s32.totalorder %s18, 0
      %p66 = por %p64, %p65
      %s68 = sadd.s32 %s67, 1
      %p71 = scmp.eq.s32.totalorder %s12, 1
      %p72 = scmp.ne.s32.totalorder %s67, %s69
      %p73 = scmp.eq.s32.totalorder %s12, 0
      %p74 = por %p72, %p73
      %p75 = scmp.ne.s32.totalorder %s67, %s69
      %p76 = scmp.eq.s32.totalorder %s17, 1
      %p77 = por %p75, %p76
      %p78 = scmp.ne.s32.totalorder %s69, %s70
      %p79 = scmp.eq.s32.totalorder %s17, 0
      %p80 = por %p78, %p79
      %p81 = scmp.ne.s32.totalorder %s69, %s70
      %p82 = scmp.eq.s32.totalorder %s18, 1
      %p83 = por %p81, %p82
      %p85 = scmp.ne.s32.totalorder %s70, %s84
      %p86 = scmp.eq.s32.totalorder %s18, 0
      %p87 = por %p85, %p86
      %s88 = ssub.s32 %s12, %s19
      %p89 = scmp.eq.s32.totalorder %s88, 0
      %s91 = sadd.s32 %s90, 1
      %s92 = scalar_select %p89, %s90, %s91
      %p95 = pneg %p89
      %p96 = scmp.eq.s32.totalorder %s12, 1
      %p97 = por %p95, %p96
      %p98 = scmp.ne.s32.totalorder %s90, %s93
      %p99 = scmp.eq.s32.totalorder %s12, 0
      %p100 = por %p98, %p99
      %p101 = scmp.ne.s32.totalorder %s90, %s93
      %p102 = scmp.eq.s32.totalorder %s17, 1
      %p103 = por %p101, %p102
      %p104 = scmp.ne.s32.totalorder %s93, %s94
      %p105 = scmp.eq.s32.totalorder %s17, 0
      %p106 = por %p104, %p105
      %p107 = scmp.ne.s32.totalorder %s93, %s94
      %p108 = scmp.eq.s32.totalorder %s18, 1
      %p109 = por %p107, %p108
      %p111 = scmp.ne.s32.totalorder %s94, %s110
      %p112 = scmp.eq.s32.totalorder %s18, 0
      %p113 = por %p111, %p112
      %p114 = scmp.le.s32.totalorder 1, %s12
      %p115 = scmp.lt.s32.totalorder %s12, 3
      %p116 = pnand %p114, %p115
      %p117 = pneg %p116
      // Predicated region
      $region9: #{tpu_custom_call.1} parent=5 // pred_check
        _
      $region10: #{tpu_custom_call.1} parent=5 // pred_check_branch
        %119 = sbr.rel (%p116) target = $region12
      $region11: #{tpu_custom_call.1} parent=5 // pred_region
        %s120 = ssub.s32 %s12, 1
        // Predicated region
        $region13: #{tpu_custom_call.1} parent=11 // pred_check
          %p121 = pneg %p59
        $region14: #{tpu_custom_call.1} parent=11 // pred_check_branch
          %123 = sbr.rel (%p121) target = $region16
        $region15: #{tpu_custom_call.1} parent=11 // pred_region
          _
        $region16: #{tpu_custom_call.1} parent=11 // pred_fallthru
          _
        // Predicated region
        $region17: #{tpu_custom_call.1} parent=11 // pred_check
          %p124 = pneg %p80
        $region18: #{tpu_custom_call.1} parent=11 // pred_check_branch
          %126 = sbr.rel (%p124) target = $region20
        $region19: #{tpu_custom_call.1} parent=11 // pred_region
          _
        $region20: #{tpu_custom_call.1} parent=11 // pred_fallthru
          _
      $region12: #{tpu_custom_call.1} parent=5 // pred_fallthru
        _
      %p127 = scmp.lt.s32.totalorder %s12, 2
      // Predicated region
      $region21: #{tpu_custom_call.1} parent=5 // pred_check
        %p128 = pneg %p127
      $region22: #{tpu_custom_call.1} parent=5 // pred_check_branch
        %130 = sbr.rel (%p128) target = $region24
      $region23: #{tpu_custom_call.1} parent=5 // pred_region
        // Predicated region
        $region25: #{tpu_custom_call.1} parent=23 // pred_check
          %p131 = pneg %p32
        $region26: #{tpu_custom_call.1} parent=23 // pred_check_branch
          %133 = sbr.rel (%p131) target = $region28
        $region27: #{tpu_custom_call.1} parent=23 // pred_region
          %s134 = smul.u32 4, %s12
          %p135 = scmp.lt.s32.totalorder %s134, 7
          %s136 = scalar_select %p135, %s134, 7
          %s137 = smul.addr %s136, 8
          %s138 = scalar_lea.vmem %s0, %s137
          %s139 = smul.u32 4, %s12
        $region28: #{tpu_custom_call.1} parent=23 // pred_fallthru
          _
      $region24: #{tpu_custom_call.1} parent=5 // pred_fallthru
        _
      %p140 = scmp.le.s32.totalorder 1, %s12
      %p141 = scmp.lt.s32.totalorder %s12, 3
      %p142 = pnand %p140, %p141
      %p143 = pneg %p142
      // Predicated region
      $region29: #{tpu_custom_call.1} parent=5 // pred_check
        _
      $region30: #{tpu_custom_call.1} parent=5 // pred_check_branch
        %145 = sbr.rel (%p142) target = $region32
      $region31: #{tpu_custom_call.1} parent=5 // pred_region
        %s146 = ssub.s32 %s12, 1
        %s147 = smul.u32 4, %s17
        %p148 = scmp.lt.s32.totalorder %s147, 7
        %s149 = scalar_select %p148, %s147, 7
        %s150 = smul.addr %s149, 8
        %s151 = scalar_lea.vmem %s0, %s150
        %p152 = pneg %p38
        %p153 = pneg %p35
        %p154 = pneg %p59
        %p155 = pneg %p56
        %p156 = pneg %p80
        %p157 = pneg %p77
        %p158 = pneg %p106
        %p159 = pneg %p103
        %s160 = sand.u32 %s93, 1
        %s161 = scalar_lea.sflag [#allocation3], %s160
        %s162 = sand.u32 %s93, 1
        %s163 = smul.addr %s162, 32
        %s164 = scalar_lea.vmem [#allocation2], %s163
        %s165 = smul.u32 4, %s17
        %p166 = scmp.lt.s32.totalorder %s165, 7
        %s167 = scalar_select %p166, %s165, 7
        %s168 = smul.addr %s167, 8
        %s169 = scalar_lea.vmem %s0, %s168
        %s170 = smul.u32 4, %s17
        %s171 = smul.u32 4, %s17
        %v173 = vld [vmem:[%s169] sm:$0xff]
        %v174 = vld [vmem:[%s169 + $0x8] sm:$0xff]
        %v175 = vld [vmem:[%s169 + $0x10] sm:$0xff]
        %v176 = vld [vmem:[%s169 + $0x18] sm:$0xff]
        %v177 = vpack.c.bf16 %v174, %v173
        %v178 = vpack.c.bf16 %v176, %v175
        %v179 = vld [vmem:[%s1] sm:$0x7]
        %v180 = vld [vmem:[%s2] sm:$0x1]
        %v182 = vperm.slane %v180, 0
        %vm184 = vcmask 48128
        %v186 = vsel %vm184, %v177, 0
        %v189 = vsel %vm184, %v178, 0
        %vm191 = vcmask 1042432
        %v193 = vsel %vm191, %v179, 0
        %195 = vmatpush.bf16.msra.mxu0 0
        %196 = vmatpush.bf16.msra.mxu0 0
        %197 = vmatpush.bf16.msra.mxu0 0
        %198 = vmatpush.bf16.msra.mxu0 0
        %199 = vmatpush.bf16.msra.mxu0 0
        %200 = vmatpush.bf16.msra.mxu0 0
        %201 = vmatpush.bf16.msra.mxu0 0
        %202 = vmatpush.bf16.msra.mxu0 %v193
        %203 = vmatmul.bf16.gmra.mxu0 %v186
        %v204 = vpop.f32.mrf.mxu0
        %v205 = vadd.f32 %v182, %v204
        %v206 = vpop.f32.mrf.mxu0
        %v207 = vadd.f32 %v182, %v206
        %208 = vmatmul.bf16.gmra.mxu0 %v189
        %v209 = vpop.f32.mrf.mxu0
        %v210 = vadd.f32 %v182, %v209
        %v211 = vpop.f32.mrf.mxu0
        %v212 = vadd.f32 %v182, %v211
        %213 = vdwg.mxu0
        %v214 = vmax.f32 %v205, 0.0
        %v215 = vmax.f32 %v207, 0.0
        %v216 = vmax.f32 %v210, 0.0
        %v217 = vmax.f32 %v212, 0.0
        %218 = vst [vmem:[%s164] sm:$0xff] %v214
        %219 = vst [vmem:[%s164 + $0x8] sm:$0xff] %v215
        %220 = vst [vmem:[%s164 + $0x10] sm:$0xff] %v216
        %221 = vst [vmem:[%s164 + $0x18] sm:$0xff] %v217
        %s222 = sand.u32 %s93, 1
        %s223 = scalar_lea.sflag [#allocation3], %s222
        %s224 = sand.u32 %s93, 1
        %s225 = smul.addr %s224, 32
        %s226 = scalar_lea.vmem [#allocation2], %s225
        // Predicated region
        $region33: #{tpu_custom_call.1} parent=31 // pred_check
          %p227 = pneg %p103
        $region34: #{tpu_custom_call.1} parent=31 // pred_check_branch
          %229 = sbr.rel (%p227) target = $region36
        $region35: #{tpu_custom_call.1} parent=31 // pred_region
          %s230 = smul.u32 4, %s17
          %232 = vsyncadd %s223, 0
          %s233 = smul.addr %s230, 8
          %s234 = scalar_lea.hbm %s3, %s233
          %s235 = sshll.u32 %s226, 4
          %s236 = int_to_ptr.vmem [resolvable:$true] %s235
          %s237 = sshll.u32 %s234, 4
          %s238 = int_to_ptr.hbm [resolvable:$true] %s237
          %243 = dma.vmem_to_hbm [thread:$0]  %s236, 512, %s238, %s223, 128, 128, 8
        $region36: #{tpu_custom_call.1} parent=31 // pred_fallthru
          _
      $region32: #{tpu_custom_call.1} parent=5 // pred_fallthru
        _
      %p244 = scmp.le.s32.totalorder 2, %s12
      // Predicated region
      $region37: #{tpu_custom_call.1} parent=5 // pred_check
        %p245 = pneg %p244
      $region38: #{tpu_custom_call.1} parent=5 // pred_check_branch
        %247 = sbr.rel (%p245) target = $region40
      $region39: #{tpu_custom_call.1} parent=5 // pred_region
        %s248 = ssub.s32 %s12, 2
        // Predicated region
        $region41: #{tpu_custom_call.1} parent=39 // pred_check
          %p249 = pneg %p109
        $region42: #{tpu_custom_call.1} parent=39 // pred_check_branch
          %251 = sbr.rel (%p249) target = $region44
        $region43: #{tpu_custom_call.1} parent=39 // pred_region
          %s252 = sand.u32 %s94, 1
          %s253 = scalar_lea.sflag [#allocation3], %s252
          %s254 = sand.u32 %s94, 1
          %s255 = smul.addr %s254, 32
          %s256 = scalar_lea.vmem [#allocation2], %s255
          %258 = dma.done %s253, 512
        $region44: #{tpu_custom_call.1} parent=39 // pred_fallthru
          _
      $region40: #{tpu_custom_call.1} parent=5 // pred_fallthru
        _
    $region6: #{tpu_custom_call.1} parent=1 // loop_footer
      %s16 = sadd.s32 1, %s12
    $region7: #{tpu_custom_call.1} parent=1 // loop_footer_branch
      %11 = sbr.rel target = $region3
    $region8: #{tpu_custom_call.1} parent=1 // loop_exit
      _
    %259 = vsyncpa [#allocation3], 1
    %s260 = scalar_lea.sflag [#allocation3], 1
    %261 = vsyncpa %s260, 1

</llo_original>
